<compile_context>
chip_gen: v7x
topology: tpu7x:2x2x1
jax: 0.10.0
libtpu: 0.0.40
codegen_flags: <defaults>
</compile_context>

<pallas_src>
import jax
import jax.numpy as jnp
from jax.experimental import pallas as pl
from jax.experimental.pallas import tpu as pltpu

NET_OUT_DIM = 256   # net_out_dimension['resnetext']
NET_STRIDE = 8      # net_stride['resnetext']


def _round_up(a, b):
    return (a + b - 1) // b * b


# --------------------------------------------------------------------------------
# Fused kernel: patch-conv matmul + out_layer linear + L2 normalize (one pass)
#   patches (tm, Cp) @ w_conv (Cp, 256) + b_conv -> feat
#   feat    (tm,256) @ w_lin  (256, D ) + b_lin  -> y
#   y / max(||y||_2, 1e-12)                      -> out
# --------------------------------------------------------------------------------
def _fused_kernel(p_ref, wc_ref, bc_ref, wl_ref, bl_ref, o_ref):
    feat = jnp.dot(p_ref[...], wc_ref[...], preferred_element_type=jnp.float32)
    feat = feat + bc_ref[...]                                   # f32
    wl = wl_ref[...]
    y = jnp.dot(feat.astype(wl.dtype), wl, preferred_element_type=jnp.float32)
    y = y + bl_ref[...]
    # F.normalize(p=2, dim=-1): x / max(||x||, 1e-12)  ==  x * rsqrt(max(ssq, 1e-24))
    ssq = jnp.sum(y * y, axis=-1, keepdims=True)
    o_ref[...] = (y * jax.lax.rsqrt(jnp.maximum(ssq, 1e-24))).astype(o_ref.dtype)


def fused_keypoint_head(patches_pad, w_conv, b_conv, w_lin, b_lin, *, tm):
    Mp, Cp = patches_pad.shape
    N = w_conv.shape[1]
    D = w_lin.shape[1]
    return pl.pallas_call(
        _fused_kernel,
        out_shape=jax.ShapeDtypeStruct((Mp, D), jnp.float32),
        grid_spec=pltpu.PrefetchScalarGridSpec(
            num_scalar_prefetch=0,
            grid=(Mp // tm,),
            in_specs=[pl.BlockSpec((tm, Cp), lambda i: (i, 0)),
                      pl.BlockSpec((Cp, N), lambda i: (0, 0)),
                      pl.BlockSpec((1, N), lambda i: (0, 0)),
                      pl.BlockSpec((N, D), lambda i: (0, 0)),
                      pl.BlockSpec((1, D), lambda i: (0, 0))],
            out_specs=pl.BlockSpec((tm, D), lambda i: (i, 0))),
        compiler_params=pltpu.CompilerParams(
            dimension_semantics=("parallel",)),   # rows independent -> v7x 2-TC sharding
    )(patches_pad, w_conv, b_conv, w_lin, b_lin)


# --------------------------------------------------------------------------------
# Wrapper glue (tiny data): gather only the K keypoint patches per image
# --------------------------------------------------------------------------------
def _gather_patches(x, r8, c8):
    """x: (B, C, H, W) NCHW; r8, c8: (B, K) int32 -> (B, K, C*8*8) patches."""
    C = x.shape[1]

    def one(xb, r, c):
        p = jax.lax.dynamic_slice(xb, (0, r * NET_STRIDE, c * NET_STRIDE),
                                  (C, NET_STRIDE, NET_STRIDE))
        return p.reshape(C * NET_STRIDE * NET_STRIDE)

    return jax.vmap(jax.vmap(one, in_axes=(None, 0, 0)),
                    in_axes=(0, 0, 0))(x, r8, c8)


def net_e2e_forward(prepared, x, keypoint_positions):
    """NetE2E.forward with n_noise_points=0, local_size=(1,1), obj_mask=None."""
    B = x.shape[0]
    # keypoints_to_pixel_index -> patch (row, col) on the stride-8 grid
    r8 = keypoint_positions[:, :, 0] // NET_STRIDE
    c8 = keypoint_positions[:, :, 1] // NET_STRIDE

    patches = _gather_patches(x, r8, c8)                       # (B, K, C*64)
    K = patches.shape[1]
    Cd = patches.shape[2]
    M = B * K
    patches = patches.reshape(M, Cd)

    # pad contraction dim to the pre-padded weight width (multiple of 128)
    Cp = prepared["w_conv"].shape[0]
    if Cd < Cp:
        patches = jnp.pad(patches, ((0, 0), (0, Cp - Cd)))

    # pad rows to a sublane/tile multiple instead of asserting divisibility
    M_pad = _round_up(M, 8)
    tm = min(512, M_pad)
    M_pad = _round_up(M_pad, tm)
    if M_pad > M:
        patches = jnp.pad(patches, ((0, M_pad - M), (0, 0)))

    patches = patches.astype(jnp.bfloat16)                     # bf16 MXU operands

    out = fused_keypoint_head(patches,
                              prepared["w_conv"], prepared["b_conv"],
                              prepared["w_lin"], prepared["b_lin"], tm=tm)
    D = prepared["w_lin"].shape[1]
    return out[:M].reshape(B, K, D)


# --------------------------------------------------------------------------------
# Parameters
# --------------------------------------------------------------------------------
def init_params(key, output_dimension, in_ch):
    """PyTorch-layout parameters (conv weight OIHW, linear weight (out, in))."""
    k1, k2, k3, k4 = jax.random.split(key, 4)
    conv_w = 0.05 * jax.random.normal(k1, (NET_OUT_DIM, in_ch, NET_STRIDE, NET_STRIDE), jnp.float32)
    conv_b = 0.01 * jax.random.normal(k2, (NET_OUT_DIM,), jnp.float32)
    lin_w = 0.05 * jax.random.normal(k3, (output_dimension, NET_OUT_DIM), jnp.float32)
    lin_b = 0.01 * jax.random.normal(k4, (output_dimension,), jnp.float32)
    return dict(conv_w=conv_w, conv_b=conv_b, lin_w=lin_w, lin_b=lin_b)


def prepare_params(params, in_ch):
    """Pre-transpose / zero-pad / bf16-cast weights once (lane-friendly layout)."""
    Cd = in_ch * NET_STRIDE * NET_STRIDE
    Cp = _round_up(Cd, 128)
    w_conv = params["conv_w"].reshape(NET_OUT_DIM, Cd).T                 # (Cd, 256)
    w_conv = jnp.pad(w_conv, ((0, Cp - Cd), (0, 0))).astype(jnp.bfloat16)
    b_conv = params["conv_b"].reshape(1, NET_OUT_DIM).astype(jnp.float32)
    w_lin = params["lin_w"].T.astype(jnp.bfloat16)                       # (256, D)
    b_lin = params["lin_b"].reshape(1, -1).astype(jnp.float32)
    return dict(w_conv=w_conv, b_conv=b_conv, w_lin=w_lin, b_lin=b_lin)


# --------------------------------------------------------------------------------
# Pure-JAX f32 reference of the same forward (full conv + gather), for checking.
# --------------------------------------------------------------------------------
def reference_forward(params, x, keypoints):
    B, C, H, W = x.shape
    hp, wp = H // NET_STRIDE, W // NET_STRIDE
    xp = x.reshape(B, C, hp, NET_STRIDE, wp, NET_STRIDE).transpose(0, 2, 4, 1, 3, 5)
    xp = xp.reshape(B, hp * wp, C * NET_STRIDE * NET_STRIDE)
    feat = xp @ params["conv_w"].reshape(NET_OUT_DIM, -1).T + params["conv_b"]
    line = W // NET_STRIDE
    idx = (keypoints[:, :, 0] // NET_STRIDE) * line + keypoints[:, :, 1] // NET_STRIDE
    g = jnp.take_along_axis(feat, idx[:, :, None], axis=1)
    y = g @ params["lin_w"].T + params["lin_b"]
    nrm = jnp.sqrt(jnp.sum(y * y, axis=-1, keepdims=True))
    return y / jnp.maximum(nrm, 1e-12)


if __name__ == "__main__":
    key = jax.random.PRNGKey(0)
    k_img, k_kp, k_par = jax.random.split(key, 3)

    B, C, H, W = 2, 3, 64, 64          # small NCHW image batch
    N_KP = 8                           # keypoints per image
    OUT_DIM = 128                      # NetE2E output_dimension

    x = jax.random.normal(k_img, (B, C, H, W), jnp.float32)
    keypoint_positions = jax.random.randint(k_kp, (B, N_KP, 2), 0, H, dtype=jnp.int32)
    params = init_params(k_par, OUT_DIM, C)
    prepared = prepare_params(params, C)

    fwd = jax.jit(net_e2e_forward)
    out = jax.block_until_ready(fwd(prepared, x, keypoint_positions))

    ref = reference_forward(params, x, keypoint_positions)
    assert out.shape == (B, N_KP, OUT_DIM), out.shape
    assert bool(jnp.all(jnp.isfinite(out)))
    assert float(jnp.max(jnp.abs(out - ref))) < 5e-2
    assert float(jnp.max(jnp.abs(jnp.linalg.norm(out, axis=-1) - 1.0))) < 1e-2

    print("KERNEL_OK")
</pallas_src>

<mosaic_0001>
module attributes {stable_mosaic.version = 11 : i64} {
  func.func @_fused_kernel(%arg0: i32, %arg1: memref<16x256xbf16, #tpu.memory_space<vmem>>, %arg2: memref<256x256xbf16, #tpu.memory_space<vmem>>, %arg3: memref<1x256xf32, #tpu.memory_space<vmem>>, %arg4: memref<256x128xbf16, #tpu.memory_space<vmem>>, %arg5: memref<1x128xf32, #tpu.memory_space<vmem>>, %arg6: memref<16x128xf32, #tpu.memory_space<vmem>>) attributes {dimension_semantics = [#tpu.dimension_semantics<parallel>], iteration_bounds = array<i64: 1>, scalar_prefetch = 0 : i64, scratch_operands = 0 : i64, tpu.core_type = #tpu.core_type<tc>, window_params = [{transform_indices = @transform_0, window_bounds = array<i64: 16, 256>}, {pipeline_mode = #tpu.pipeline_mode<synchronous>, transform_indices = @transform_1, window_bounds = array<i64: 256, 256>}, {pipeline_mode = #tpu.pipeline_mode<synchronous>, transform_indices = @transform_2, window_bounds = array<i64: 1, 256>}, {pipeline_mode = #tpu.pipeline_mode<synchronous>, transform_indices = @transform_3, window_bounds = array<i64: 256, 128>}, {pipeline_mode = #tpu.pipeline_mode<synchronous>, transform_indices = @transform_4, window_bounds = array<i64: 1, 128>}, {transform_indices = @transform_5, window_bounds = array<i64: 16, 128>}]} {
    %c0 = arith.constant 0 : index
    %c0_0 = arith.constant 0 : index
    %0 = vector.load %arg1[%c0, %c0_0] : memref<16x256xbf16, #tpu.memory_space<vmem>>, vector<16x256xbf16>
    %c0_1 = arith.constant 0 : index
    %c0_2 = arith.constant 0 : index
    %1 = vector.load %arg2[%c0_1, %c0_2] : memref<256x256xbf16, #tpu.memory_space<vmem>>, vector<256x256xbf16>
    %cst = arith.constant dense<0.000000e+00> : vector<16x256xf32>
    %2 = tpu.matmul %0, %1, %cst {dimension_numbers = #tpu.dot_dimension_numbers<[1], [0], [0], [1], [0, 0, 1, 1], [], []>} : vector<16x256xbf16>, vector<256x256xbf16>, vector<16x256xf32> -> vector<16x256xf32>
    %c0_3 = arith.constant 0 : index
    %c0_4 = arith.constant 0 : index
    %3 = vector.load %arg3[%c0_3, %c0_4] : memref<1x256xf32, #tpu.memory_space<vmem>>, vector<1x256xf32>
    %4 = vector.broadcast %3 : vector<1x256xf32> to vector<16x256xf32>
    %5 = arith.addf %2, %4 : vector<16x256xf32>
    %c0_5 = arith.constant 0 : index
    %c0_6 = arith.constant 0 : index
    %6 = vector.load %arg4[%c0_5, %c0_6] : memref<256x128xbf16, #tpu.memory_space<vmem>>, vector<256x128xbf16>
    %7 = arith.truncf %5 : vector<16x256xf32> to vector<16x256xbf16>
    %cst_7 = arith.constant dense<0.000000e+00> : vector<16x128xf32>
    %8 = tpu.matmul %7, %6, %cst_7 {dimension_numbers = #tpu.dot_dimension_numbers<[1], [0], [0], [1], [0, 0, 1, 1], [], []>} : vector<16x256xbf16>, vector<256x128xbf16>, vector<16x128xf32> -> vector<16x128xf32>
    %c0_8 = arith.constant 0 : index
    %c0_9 = arith.constant 0 : index
    %9 = vector.load %arg5[%c0_8, %c0_9] : memref<1x128xf32, #tpu.memory_space<vmem>>, vector<1x128xf32>
    %10 = vector.broadcast %9 : vector<1x128xf32> to vector<16x128xf32>
    %11 = arith.addf %8, %10 : vector<16x128xf32>
    %12 = arith.mulf %11, %11 : vector<16x128xf32>
    %cst_10 = arith.constant dense<0.000000e+00> : vector<16xf32>
    %13 = vector.multi_reduction <add>, %12, %cst_10 [1] : vector<16x128xf32> to vector<16xf32>
    %14 = vector.shape_cast %13 : vector<16xf32> to vector<16x1xf32>
    %cst_11 = arith.constant 1.000000e-24 : f32
    %15 = vector.broadcast %cst_11 : f32 to vector<16x1xf32>
    %16 = arith.maximumf %14, %15 : vector<16x1xf32>
    %17 = math.rsqrt %16 : vector<16x1xf32>
    %18 = vector.broadcast %17 : vector<16x1xf32> to vector<16x128xf32>
    %19 = arith.mulf %11, %18 : vector<16x128xf32>
    %c0_12 = arith.constant 0 : index
    %c0_13 = arith.constant 0 : index
    %20 = vector.load %arg6[%c0_12, %c0_13] : memref<16x128xf32, #tpu.memory_space<vmem>>, vector<16x128xf32>
    tpu.vector_store %arg6[%c0_12, %c0_13], %19 {strides = array<i32>} : memref<16x128xf32, #tpu.memory_space<vmem>>, vector<16x128xf32>,
    return
  }
  func.func @transform_0(%arg0: i32) -> (i32, i32) {
    %c0_i32 = arith.constant 0 : i32
    %c0_i32_0 = arith.constant 0 : i32
    return %arg0, %c0_i32 : i32, i32
  }
  func.func @transform_1(%arg0: i32) -> (i32, i32) {
    %c0_i32 = arith.constant 0 : i32
    %c0_i32_0 = arith.constant 0 : i32
    %c0_i32_1 = arith.constant 0 : i32
    return %c0_i32, %c0_i32_0 : i32, i32
  }
  func.func @transform_2(%arg0: i32) -> (i32, i32) {
    %c0_i32 = arith.constant 0 : i32
    %c0_i32_0 = arith.constant 0 : i32
    %c0_i32_1 = arith.constant 0 : i32
    return %c0_i32, %c0_i32_0 : i32, i32
  }
  func.func @transform_3(%arg0: i32) -> (i32, i32) {
    %c0_i32 = arith.constant 0 : i32
    %c0_i32_0 = arith.constant 0 : i32
    %c0_i32_1 = arith.constant 0 : i32
    return %c0_i32, %c0_i32_0 : i32, i32
  }
  func.func @transform_4(%arg0: i32) -> (i32, i32) {
    %c0_i32 = arith.constant 0 : i32
    %c0_i32_0 = arith.constant 0 : i32
    %c0_i32_1 = arith.constant 0 : i32
    return %c0_i32, %c0_i32_0 : i32, i32
  }
  func.func @transform_5(%arg0: i32) -> (i32, i32) {
    %c0_i32 = arith.constant 0 : i32
    %c0_i32_0 = arith.constant 0 : i32
    return %arg0, %c0_i32 : i32, i32
  }
}

</mosaic_0001>

<llo_original>
// kernel: net_e2e_forward.1
$region0: #{net_e2e_forward.1}
  #allocation0 [shape = 'u32[]', space=smem, size = 0x4, offset = 0x4, fixed_abs, tag = 'smem constant byte address 0x4 - core index']
  #allocation1 [shape = 'u32[144,128]{1,0:T(1,128)}', space=vmem, size = 0x12000, scoped, tag = 'internal scratch']
  %s0 = inlined_call_operand.vmem [shape: bf16[16,256], index: 0, kind: input, shape index: {}]
  %s1 = inlined_call_operand.vmem [shape: bf16[256,256], index: 1, kind: input, shape index: {}]
  %s2 = inlined_call_operand.vmem [shape: f32[1,256], index: 2, kind: input, shape index: {}]
  %s3 = inlined_call_operand.vmem [shape: bf16[256,128], index: 3, kind: input, shape index: {}]
  %s4 = inlined_call_operand.vmem [shape: f32[1,128], index: 4, kind: input, shape index: {}]
  %s5 = inlined_call_operand.hbm [shape: f32[16,128], index: 5, kind: output, shape index: {}]
  %s6 = sld [smem:[#allocation0]]
  $region30: #{net_e2e_forward.1} parent=0
    _
  %s8 = ssub.s32 1, %s6
  %s9 = scalar_select 0, %s8, %s6
  $region1: #{net_e2e_forward.1} parent=0
    #allocation2 [shape = 'u8[8192]{0}', space=vmem, size = 0x2000, scoped, tag = 'output window, operand 0, single buffered']
    #allocation3 [shape = 's32[1]{0}', space=sflag, size = 0x4, scoped, tag = 'scoped memory for net_e2e_forward.1']
    %10 = vsyncpa [#allocation3], 0
    // Predicated region
    $region2: #{net_e2e_forward.1} parent=1 // pred_check
      _
    $region3: #{net_e2e_forward.1} parent=1 // pred_check_branch
      %12 = sbr.rel (0) target = $region5
    $region4: #{net_e2e_forward.1} parent=1 // pred_region
      _
    $region5: #{net_e2e_forward.1} parent=1 // pred_fallthru
      _
    // Predicated region
    $region6: #{net_e2e_forward.1} parent=1 // pred_check
      _
    $region7: #{net_e2e_forward.1} parent=1 // pred_check_branch
      %14 = sbr.rel (0) target = $region9
    $region8: #{net_e2e_forward.1} parent=1 // pred_region
      _
    $region9: #{net_e2e_forward.1} parent=1 // pred_fallthru
      _
    // Predicated region
    $region10: #{net_e2e_forward.1} parent=1 // pred_check
      _
    $region11: #{net_e2e_forward.1} parent=1 // pred_check_branch
      %16 = sbr.rel (0) target = $region13
    $region12: #{net_e2e_forward.1} parent=1 // pred_region
      _
    $region13: #{net_e2e_forward.1} parent=1 // pred_fallthru
      _
    // Predicated region
    $region14: #{net_e2e_forward.1} parent=1 // pred_check
      _
    $region15: #{net_e2e_forward.1} parent=1 // pred_check_branch
      %18 = sbr.rel (0) target = $region17
    $region16: #{net_e2e_forward.1} parent=1 // pred_region
      _
    $region17: #{net_e2e_forward.1} parent=1 // pred_fallthru
      _
    // Predicated region
    $region18: #{net_e2e_forward.1} parent=1 // pred_check
      _
    $region19: #{net_e2e_forward.1} parent=1 // pred_check_branch
      %20 = sbr.rel (0) target = $region21
    $region20: #{net_e2e_forward.1} parent=1 // pred_region
      _
    $region21: #{net_e2e_forward.1} parent=1 // pred_fallthru
      _
    %v22 = vld [vmem:[%s0] sm:$0xff]
    %v23 = vld [vmem:[%s0 + $0x8] sm:$0xff]
    %v24 = vld [vmem:[%s1] sm:$0xff]
    %v25 = vld [vmem:[%s1 + $0x8] sm:$0xff]
    %v26 = vld [vmem:[%s1 + $0x10] sm:$0xff]
    %v27 = vld [vmem:[%s1 + $0x18] sm:$0xff]
    %v28 = vld [vmem:[%s1 + $0x20] sm:$0xff]
    %v29 = vld [vmem:[%s1 + $0x28] sm:$0xff]
    %v30 = vld [vmem:[%s1 + $0x30] sm:$0xff]
    %v31 = vld [vmem:[%s1 + $0x38] sm:$0xff]
    %v32 = vld [vmem:[%s1 + $0x40] sm:$0xff]
    %v33 = vld [vmem:[%s1 + $0x48] sm:$0xff]
    %v34 = vld [vmem:[%s1 + $0x50] sm:$0xff]
    %v35 = vld [vmem:[%s1 + $0x58] sm:$0xff]
    %v36 = vld [vmem:[%s1 + $0x60] sm:$0xff]
    %v37 = vld [vmem:[%s1 + $0x68] sm:$0xff]
    %v38 = vld [vmem:[%s1 + $0x70] sm:$0xff]
    %v39 = vld [vmem:[%s1 + $0x78] sm:$0xff]
    %v40 = vld [vmem:[%s1 + $0x80] sm:$0xff]
    %v41 = vld [vmem:[%s1 + $0x88] sm:$0xff]
    %v42 = vld [vmem:[%s1 + $0x90] sm:$0xff]
    %v43 = vld [vmem:[%s1 + $0x98] sm:$0xff]
    %v44 = vld [vmem:[%s1 + $0xa0] sm:$0xff]
    %v45 = vld [vmem:[%s1 + $0xa8] sm:$0xff]
    %v46 = vld [vmem:[%s1 + $0xb0] sm:$0xff]
    %v47 = vld [vmem:[%s1 + $0xb8] sm:$0xff]
    %v48 = vld [vmem:[%s1 + $0xc0] sm:$0xff]
    %v49 = vld [vmem:[%s1 + $0xc8] sm:$0xff]
    %v50 = vld [vmem:[%s1 + $0xd0] sm:$0xff]
    %v51 = vld [vmem:[%s1 + $0xd8] sm:$0xff]
    %v52 = vld [vmem:[%s1 + $0xe0] sm:$0xff]
    %v53 = vld [vmem:[%s1 + $0xe8] sm:$0xff]
    %v54 = vld [vmem:[%s1 + $0xf0] sm:$0xff]
    %v55 = vld [vmem:[%s1 + $0xf8] sm:$0xff]
    %v56 = vld [vmem:[%s2] sm:$0x3]
    %v58 = vlaneseq
    %v59 = vshrl.u32 %v58, 7
    %v60 = vsub.s32 0, %v59
    %v61 = vrot.slane %v56, %v60
    %v62 = vlaneseq
    %v63 = vshrl.u32 %v62, 7
    %v64 = vsub.s32 1, %v63
    %v65 = vrot.slane %v56, %v64
    %v70 = vunpack.c.l.b16 %v22
    %v71 = vunpack.c.h.b16 %v22
    %v72 = vunpack.c.l.b16 %v23
    %v73 = vunpack.c.h.b16 %v23
    %v74 = vpack.c.b16 %v72, %v70
    %v75 = vpack.c.b16 %v73, %v71
    %v110 = vunpack.c.l.b16 %v24
    %v111 = vunpack.c.h.b16 %v24
    %v112 = vunpack.c.l.b16 %v25
    %v113 = vunpack.c.h.b16 %v25
    %v114 = vunpack.c.l.b16 %v26
    %v115 = vunpack.c.h.b16 %v26
    %v116 = vunpack.c.l.b16 %v27
    %v117 = vunpack.c.h.b16 %v27
    %v118 = vunpack.c.l.b16 %v28
    %v119 = vunpack.c.h.b16 %v28
    %v120 = vunpack.c.l.b16 %v29
    %v121 = vunpack.c.h.b16 %v29
    %v122 = vunpack.c.l.b16 %v30
    %v123 = vunpack.c.h.b16 %v30
    %v124 = vunpack.c.l.b16 %v31
    %v125 = vunpack.c.h.b16 %v31
    %v126 = vunpack.c.l.b16 %v32
    %v127 = vunpack.c.h.b16 %v32
    %v128 = vunpack.c.l.b16 %v33
    %v129 = vunpack.c.h.b16 %v33
    %v130 = vunpack.c.l.b16 %v34
    %v131 = vunpack.c.h.b16 %v34
    %v132 = vunpack.c.l.b16 %v35
    %v133 = vunpack.c.h.b16 %v35
    %v134 = vunpack.c.l.b16 %v36
    %v135 = vunpack.c.h.b16 %v36
    %v136 = vunpack.c.l.b16 %v37
    %v137 = vunpack.c.h.b16 %v37
    %v138 = vunpack.c.l.b16 %v38
    %v139 = vunpack.c.h.b16 %v38
    %v140 = vunpack.c.l.b16 %v39
    %v141 = vunpack.c.h.b16 %v39
    %v142 = vunpack.c.l.b16 %v40
    %v143 = vunpack.c.h.b16 %v40
    %v144 = vunpack.c.l.b16 %v41
    %v145 = vunpack.c.h.b16 %v41
    %v146 = vunpack.c.l.b16 %v42
    %v147 = vunpack.c.h.b16 %v42
    %v148 = vunpack.c.l.b16 %v43
    %v149 = vunpack.c.h.b16 %v43
    %v150 = vunpack.c.l.b16 %v44
    %v151 = vunpack.c.h.b16 %v44
    %v152 = vunpack.c.l.b16 %v45
    %v153 = vunpack.c.h.b16 %v45
    %v154 = vunpack.c.l.b16 %v46
    %v155 = vunpack.c.h.b16 %v46
    %v156 = vunpack.c.l.b16 %v47
    %v157 = vunpack.c.h.b16 %v47
    %v158 = vunpack.c.l.b16 %v48
    %v159 = vunpack.c.h.b16 %v48
    %v160 = vunpack.c.l.b16 %v49
    %v161 = vunpack.c.h.b16 %v49
    %v162 = vunpack.c.l.b16 %v50
    %v163 = vunpack.c.h.b16 %v50
    %v164 = vunpack.c.l.b16 %v51
    %v165 = vunpack.c.h.b16 %v51
    %v166 = vunpack.c.l.b16 %v52
    %v167 = vunpack.c.h.b16 %v52
    %v168 = vunpack.c.l.b16 %v53
    %v169 = vunpack.c.h.b16 %v53
    %v170 = vunpack.c.l.b16 %v54
    %v171 = vunpack.c.h.b16 %v54
    %v172 = vunpack.c.l.b16 %v55
    %v173 = vunpack.c.h.b16 %v55
    %v174 = vpack.c.b16 %v112, %v110
    %v175 = vpack.c.b16 %v113, %v111
    %v176 = vpack.c.b16 %v116, %v114
    %v177 = vpack.c.b16 %v117, %v115
    %v178 = vpack.c.b16 %v120, %v118
    %v179 = vpack.c.b16 %v121, %v119
    %v180 = vpack.c.b16 %v124, %v122
    %v181 = vpack.c.b16 %v125, %v123
    %v182 = vpack.c.b16 %v128, %v126
    %v183 = vpack.c.b16 %v129, %v127
    %v184 = vpack.c.b16 %v132, %v130
    %v185 = vpack.c.b16 %v133, %v131
    %v186 = vpack.c.b16 %v136, %v134
    %v187 = vpack.c.b16 %v137, %v135
    %v188 = vpack.c.b16 %v140, %v138
    %v189 = vpack.c.b16 %v141, %v139
    %v190 = vpack.c.b16 %v144, %v142
    %v191 = vpack.c.b16 %v145, %v143
    %v192 = vpack.c.b16 %v148, %v146
    %v193 = vpack.c.b16 %v149, %v147
    %v194 = vpack.c.b16 %v152, %v150
    %v195 = vpack.c.b16 %v153, %v151
    %v196 = vpack.c.b16 %v156, %v154
    %v197 = vpack.c.b16 %v157, %v155
    %v198 = vpack.c.b16 %v160, %v158
    %v199 = vpack.c.b16 %v161, %v159
    %v200 = vpack.c.b16 %v164, %v162
    %v201 = vpack.c.b16 %v165, %v163
    %v202 = vpack.c.b16 %v168, %v166
    %v203 = vpack.c.b16 %v169, %v167
    %v204 = vpack.c.b16 %v172, %v170
    %v205 = vpack.c.b16 %v173, %v171
    %238 = vmatprep.subr.bf16.mxu0 %v175
    %239 = vmatpush1.bf16.msra.mxu0 %v174
    %240 = vmatprep.subr.bf16.mxu0 %v177
    %241 = vmatpush1.bf16.msra.mxu0 %v176
    %242 = vmatprep.subr.bf16.mxu0 %v179
    %243 = vmatpush1.bf16.msra.mxu0 %v178
    %244 = vmatprep.subr.bf16.mxu0 %v181
    %245 = vmatpush1.bf16.msra.mxu0 %v180
    %246 = vmatprep.subr.bf16.mxu0 %v183
    %247 = vmatpush1.bf16.msra.mxu0 %v182
    %248 = vmatprep.subr.bf16.mxu0 %v185
    %249 = vmatpush1.bf16.msra.mxu0 %v184
    %250 = vmatprep.subr.bf16.mxu0 %v187
    %251 = vmatpush1.bf16.msra.mxu0 %v186
    %252 = vmatprep.subr.bf16.mxu0 %v189
    %253 = vmatpush1.bf16.msra.mxu0 %v188
    %254 = vmatprep.subr.bf16.mxu0 %v191
    %255 = vmatpush1.bf16.msra.mxu0 %v190
    %256 = vmatprep.subr.bf16.mxu0 %v193
    %257 = vmatpush1.bf16.msra.mxu0 %v192
    %258 = vmatprep.subr.bf16.mxu0 %v195
    %259 = vmatpush1.bf16.msra.mxu0 %v194
    %260 = vmatprep.subr.bf16.mxu0 %v197
    %261 = vmatpush1.bf16.msra.mxu0 %v196
    %262 = vmatprep.subr.bf16.mxu0 %v199
    %263 = vmatpush1.bf16.msra.mxu0 %v198
    %264 = vmatprep.subr.bf16.mxu0 %v201
    %265 = vmatpush1.bf16.msra.mxu0 %v200
    %266 = vmatprep.subr.bf16.mxu0 %v203
    %267 = vmatpush1.bf16.msra.mxu0 %v202
    %268 = vmatprep.subr.bf16.mxu0 %v205
    %269 = vmatpush1.bf16.msra.mxu0 %v204
    %270 = vmatprep.mubr.bf16.mxu0 %v75
    %271 = vmatmul.mubr.bf16.gmra.mrb[0].mxu0 %v74
    %v272 = vpop.f32.mrb[0].mxu0
    %v273 = vadd.f32 %v61, %v272
    %v274 = vpop.f32.mrb[0].mxu0
    %v275 = vadd.f32 %v65, %v274
    %v276 = vpop.f32.mrb[0].mxu0
    %v277 = vadd.f32 %v61, %v276
    %v278 = vpop.f32.mrb[0].mxu0
    %v279 = vadd.f32 %v65, %v278
    %280 = vdwg.mxu0
    %v281 = vld [vmem:[%s3] sm:$0xf]
    %v282 = vld [vmem:[%s3 + $0x4] sm:$0xf]
    %v283 = vld [vmem:[%s3 + $0x8] sm:$0xf]
    %v284 = vld [vmem:[%s3 + $0xc] sm:$0xf]
    %v285 = vld [vmem:[%s3 + $0x10] sm:$0xf]
    %v286 = vld [vmem:[%s3 + $0x14] sm:$0xf]
    %v287 = vld [vmem:[%s3 + $0x18] sm:$0xf]
    %v288 = vld [vmem:[%s3 + $0x1c] sm:$0xf]
    %v289 = vld [vmem:[%s3 + $0x20] sm:$0xf]
    %v290 = vld [vmem:[%s3 + $0x24] sm:$0xf]
    %v291 = vld [vmem:[%s3 + $0x28] sm:$0xf]
    %v292 = vld [vmem:[%s3 + $0x2c] sm:$0xf]
    %v293 = vld [vmem:[%s3 + $0x30] sm:$0xf]
    %v294 = vld [vmem:[%s3 + $0x34] sm:$0xf]
    %v295 = vld [vmem:[%s3 + $0x38] sm:$0xf]
    %v296 = vld [vmem:[%s3 + $0x3c] sm:$0xf]
    %v297 = vld [vmem:[%s3 + $0x40] sm:$0xf]
    %v298 = vld [vmem:[%s3 + $0x44] sm:$0xf]
    %v299 = vld [vmem:[%s3 + $0x48] sm:$0xf]
    %v300 = vld [vmem:[%s3 + $0x4c] sm:$0xf]
    %v301 = vld [vmem:[%s3 + $0x50] sm:$0xf]
    %v302 = vld [vmem:[%s3 + $0x54] sm:$0xf]
    %v303 = vld [vmem:[%s3 + $0x58] sm:$0xf]
    %v304 = vld [vmem:[%s3 + $0x5c] sm:$0xf]
    %v305 = vld [vmem:[%s3 + $0x60] sm:$0xf]
    %v306 = vld [vmem:[%s3 + $0x64] sm:$0xf]
    %v307 = vld [vmem:[%s3 + $0x68] sm:$0xf]
    %v308 = vld [vmem:[%s3 + $0x6c] sm:$0xf]
    %v309 = vld [vmem:[%s3 + $0x70] sm:$0xf]
    %v310 = vld [vmem:[%s3 + $0x74] sm:$0xf]
    %v311 = vld [vmem:[%s3 + $0x78] sm:$0xf]
    %v312 = vld [vmem:[%s3 + $0x7c] sm:$0xf]
    %v313 = vpack.c.bf16 %v277, %v273
    %v314 = vpack.c.bf16 %v279, %v275
    %v315 = vld [vmem:[%s4] sm:$0x1]
    %v317 = vlaneseq
    %v318 = vshrl.u32 %v317, 7
    %v319 = vsub.s32 0, %v318
    %v320 = vrot.slane %v315, %v319
    %v354 = vunpack.c.l.b16 %v281
    %v355 = vunpack.c.l.b16 %v282
    %v356 = vunpack.c.l.b16 %v283
    %v357 = vunpack.c.l.b16 %v284
    %v358 = vunpack.c.l.b16 %v285
    %v359 = vunpack.c.l.b16 %v286
    %v360 = vunpack.c.l.b16 %v287
    %v361 = vunpack.c.l.b16 %v288
    %v362 = vunpack.c.l.b16 %v289
    %v363 = vunpack.c.l.b16 %v290
    %v364 = vunpack.c.l.b16 %v291
    %v365 = vunpack.c.l.b16 %v292
    %v366 = vunpack.c.l.b16 %v293
    %v367 = vunpack.c.l.b16 %v294
    %v368 = vunpack.c.l.b16 %v295
    %v369 = vunpack.c.l.b16 %v296
    %v370 = vunpack.c.l.b16 %v297
    %v371 = vunpack.c.l.b16 %v298
    %v372 = vunpack.c.l.b16 %v299
    %v373 = vunpack.c.l.b16 %v300
    %v374 = vunpack.c.l.b16 %v301
    %v375 = vunpack.c.l.b16 %v302
    %v376 = vunpack.c.l.b16 %v303
    %v377 = vunpack.c.l.b16 %v304
    %v378 = vunpack.c.l.b16 %v305
    %v379 = vunpack.c.l.b16 %v306
    %v380 = vunpack.c.l.b16 %v307
    %v381 = vunpack.c.l.b16 %v308
    %v382 = vunpack.c.l.b16 %v309
    %v383 = vunpack.c.l.b16 %v310
    %v384 = vunpack.c.l.b16 %v311
    %v385 = vunpack.c.l.b16 %v312
    %v386 = vpack.c.b16 %v355, %v354
    %v387 = vpack.c.b16 %v357, %v356
    %v388 = vpack.c.b16 %v359, %v358
    %v389 = vpack.c.b16 %v361, %v360
    %v390 = vpack.c.b16 %v363, %v362
    %v391 = vpack.c.b16 %v365, %v364
    %v392 = vpack.c.b16 %v367, %v366
    %v393 = vpack.c.b16 %v369, %v368
    %v394 = vpack.c.b16 %v371, %v370
    %v395 = vpack.c.b16 %v373, %v372
    %v396 = vpack.c.b16 %v375, %v374
    %v397 = vpack.c.b16 %v377, %v376
    %v398 = vpack.c.b16 %v379, %v378
    %v399 = vpack.c.b16 %v381, %v380
    %v400 = vpack.c.b16 %v383, %v382
    %v401 = vpack.c.b16 %v385, %v384
    %418 = vmatprep.subr.bf16.mxu0 0
    %419 = vmatpush1.bf16.msra.mxu0 %v386
    %420 = vmatprep.subr.bf16.mxu0 0
    %421 = vmatpush1.bf16.msra.mxu0 %v387
    %422 = vmatprep.subr.bf16.mxu0 0
    %423 = vmatpush1.bf16.msra.mxu0 %v388
    %424 = vmatprep.subr.bf16.mxu0 0
    %425 = vmatpush1.bf16.msra.mxu0 %v389
    %426 = vmatprep.subr.bf16.mxu0 0
    %427 = vmatpush1.bf16.msra.mxu0 %v390
    %428 = vmatprep.subr.bf16.mxu0 0
    %429 = vmatpush1.bf16.msra.mxu0 %v391
    %430 = vmatprep.subr.bf16.mxu0 0
    %431 = vmatpush1.bf16.msra.mxu0 %v392
    %432 = vmatprep.subr.bf16.mxu0 0
    %433 = vmatpush1.bf16.msra.mxu0 %v393
    %434 = vmatprep.subr.bf16.mxu0 0
    %435 = vmatpush1.bf16.msra.mxu0 %v394
    %436 = vmatprep.subr.bf16.mxu0 0
    %437 = vmatpush1.bf16.msra.mxu0 %v395
    %438 = vmatprep.subr.bf16.mxu0 0
    %439 = vmatpush1.bf16.msra.mxu0 %v396
    %440 = vmatprep.subr.bf16.mxu0 0
    %441 = vmatpush1.bf16.msra.mxu0 %v397
    %442 = vmatprep.subr.bf16.mxu0 0
    %443 = vmatpush1.bf16.msra.mxu0 %v398
    %444 = vmatprep.subr.bf16.mxu0 0
    %445 = vmatpush1.bf16.msra.mxu0 %v399
    %446 = vmatprep.subr.bf16.mxu0 0
    %447 = vmatpush1.bf16.msra.mxu0 %v400
    %448 = vmatprep.subr.bf16.mxu0 0
    %449 = vmatpush1.bf16.msra.mxu0 %v401
    %450 = vmatprep.mubr.bf16.mxu0 %v314
    %451 = vmatmul.mubr.bf16.gmra.mrb[0].mxu0 %v313
    %v452 = vpop.f32.mrb[0].mxu0
    %v453 = vadd.f32 %v320, %v452
    %v454 = vpop.f32.mrb[0].mxu0
    %v455 = vpop.f32.mrb[0].mxu0
    %v456 = vadd.f32 %v320, %v455
    %v457 = vpop.f32.mrb[0].mxu0
    %458 = vdwg.mxu0
    %v459 = vmul.f32 %v453, %v453
    %v460 = vmul.f32 %v456, %v456
    %461 = vadd.xlane.f32.xlu0 %v459
    %v462 = vpop.xlane.xlu0 %461
    %463 = vadd.xlane.f32.xlu0 %v460
    %v464 = vpop.xlane.xlu0 %463
    %v465 = vmax.f32 %v462, 1e-24
    %v466 = vmax.f32 %v464, 1e-24
    %v467 = vrsqrt.pop %v465
    %v468 = vrsqrt.pop %v466
    %v469 = vmul.f32 %v453, %v467
    %v470 = vmul.f32 %v456, %v468
    %471 = vst [vmem:[#allocation2] sm:$0xff] %v469
    %472 = vst [vmem:[#allocation2 + $0x8] sm:$0xff] %v470
    // Predicated region
    $region22: #{net_e2e_forward.1} parent=1 // pred_check
      _
    $region23: #{net_e2e_forward.1} parent=1 // pred_check_branch
      %474 = sbr.rel (0) target = $region25
    $region24: #{net_e2e_forward.1} parent=1 // pred_region
      %s476 = ssub.s32 256, 256
      %477 = vsyncadd [#allocation3], %s476
      %s478 = sshll.u32 [#allocation2], 4
      %s479 = int_to_ptr.vmem [resolvable:$true] %s478
      %484 = dma.vmem_to_hbm [thread:$0]  %s479, 256, %s5, [#allocation3], 128, 128, 8
    $region25: #{net_e2e_forward.1} parent=1 // pred_fallthru
      _
    // Predicated region
    $region26: #{net_e2e_forward.1} parent=1 // pred_check
      _
    $region27: #{net_e2e_forward.1} parent=1 // pred_check_branch
      %486 = sbr.rel (0) target = $region29
    $region28: #{net_e2e_forward.1} parent=1 // pred_region
      %487 = dma.done [#allocation3], 256
    $region29: #{net_e2e_forward.1} parent=1 // pred_fallthru
      _
    %488 = vsyncpa [#allocation3], 1

</llo_original>
